<compile_context>
chip_gen: v5e
topology: v5e:2x2
jax: 0.10.0
libtpu: 0.0.40
codegen_flags: <defaults>
</compile_context>

<pallas_src>
import functools

import numpy as np

import jax
import jax.numpy as jnp
from jax.experimental import pallas as pl
from jax.experimental.pallas import tpu as pltpu


# ----------------------------------------------------------------------------
# Static layout (shared by prepare_params, the wrapper and the kernel).
# ----------------------------------------------------------------------------
def _layout(obs_dim, hidden_size, option_dim):
    H0, W0, C0 = int(obs_dim[0]), int(obs_dim[1]), 3
    O1, O2, O3 = 16, 32, 64
    H1, W1 = H0 - 1, W0 - 1
    Hp, Wp = H1 // 2, W1 // 2
    E1 = (W1 + 1) // 2
    H2, W2 = Hp - 1, Wp - 1
    H3, W3 = H2 - 1, W2 - 1
    HS, OD = int(hidden_size), int(option_dim)
    assert H3 >= 1 and W3 >= 1, "obs too small for the conv stack"

    S = H0 + (H0 % 2)                       # even per-image row stride
    K1 = W0 * C0
    K1p = ((K1 + 7) // 8) * 8               # padded conv1 contraction dim
    N1 = W1 * O1
    K2, N2 = Wp * O1, W2 * O2
    K3, N3 = N2, W3 * O3
    G4 = 4 * HS
    OUTW = ((2 * HS + OD + 127) // 128) * 128   # lane-dense packed output width
    QW = OUTW - 2 * HS
    LW = max(128, N1, N2, N3, G4, QW)       # lane width of both param slabs

    def rnd8(v):
        return ((v + 7) // 8) * 8

    r = 0
    r_m1a = r; r += K1p
    r_m1b = r; r += K1p
    r_m2a = r; r += K2
    r_m2b = r; r += K2
    r_m3a = r; r += K3
    r_m3b = r; r += K3
    r_wg = r;  r += H3 * N3
    r_whh = r; r += rnd8(HS)
    r_wq = r;  r += rnd8(HS)
    WROWS = rnd8(r)

    return dict(H0=H0, W0=W0, C0=C0, O1=O1, O2=O2, O3=O3,
                H1=H1, W1=W1, Hp=Hp, Wp=Wp, E1=E1, H2=H2, W2=W2,
                H3=H3, W3=W3, HS=HS, OD=OD, S=S,
                K1=K1, K1p=K1p, N1=N1, K2=K2, N2=N2, K3=K3, N3=N3,
                G4=G4, OUTW=OUTW, QW=QW, LW=LW,
                r_m1a=r_m1a, r_m1b=r_m1b, r_m2a=r_m2a, r_m2b=r_m2b,
                r_m3a=r_m3a, r_m3b=r_m3b, r_wg=r_wg, r_whh=r_whh,
                r_wq=r_wq, WROWS=WROWS)


# ----------------------------------------------------------------------------
# Fused kernel.  Activation layout: 2-D slabs with rows = (batch, h) at a
# fixed per-image stride S, cols = (w, channel).  Every conv is two banded
# GEMMs (width folded into the precomputed banded matrices, the 2-tap height
# kernel as a row-shifted pair of dots); rows that straddle an image boundary
# are junk-but-finite and are never read downstream.
# ----------------------------------------------------------------------------
def _fused_kernel(a0_ref, st_ref, w_ref, b_ref, out_ref, g_scr, *, B, L):
    f32 = jnp.float32
    cdt = w_ref.dtype                      # MXU operand dtype (bf16)

    S, HS = L["S"], L["HS"]
    H1, Hp, H2, H3 = L["H1"], L["Hp"], L["H2"], L["H3"]
    O1, E1, Wp = L["O1"], L["E1"], L["Wp"]
    K1p, N1 = L["K1p"], L["N1"]
    K2, N2, K3, N3 = L["K2"], L["N2"], L["K3"], L["N3"]
    G4, QW = L["G4"], L["QW"]

    base = (B - 1) * S                     # row offset of the last image
    n1 = base + H1                         # conv1 rows we need
    npool = base + 2 * Hp - 1              # pooled rows we need
    n2 = base + 2 * H2 - 1                 # conv2 rows we need
    n3 = base + 2 * H3 - 1                 # conv3 rows we need
    ng = base + 1                          # gate pre-activation rows we need

    b1 = b_ref[0:1, 0:N1]
    b2 = b_ref[1:2, 0:N2]
    b3 = b_ref[2:3, 0:N3]
    bl = b_ref[3:4, 0:G4]
    bq = b_ref[4:5, 0:QW]

    # -- conv1 (2x2, 3->16) + ReLU, all images at once ------------------------
    c1 = (jnp.dot(a0_ref[0:n1, :], w_ref[L["r_m1a"]:L["r_m1a"] + K1p, 0:N1],
                  preferred_element_type=f32)
          + jnp.dot(a0_ref[1:n1 + 1, :], w_ref[L["r_m1b"]:L["r_m1b"] + K1p, 0:N1],
                    preferred_element_type=f32)
          + b1)
    c1 = jnp.maximum(c1, 0.0)              # (n1, N1), cols in (even-w | odd-w) order

    # -- MaxPool2d(2,2), fully in registers -----------------------------------
    # width pairs = the two contiguous column halves; height pairs = 1-row
    # shifted max.  Valid pooled rows sit at even per-image offsets.
    cw = jnp.maximum(c1[:, 0:Wp * O1], c1[:, E1 * O1:E1 * O1 + Wp * O1])
    hp = jnp.maximum(cw[0:npool, :], cw[1:npool + 1, :])   # (npool, Wp*O1)

    # -- conv2 (2x2, 16->32) + ReLU (height taps are 2 rows apart) ------------
    hpc = hp.astype(cdt)
    c2 = (jnp.dot(hpc[0:n2, :], w_ref[L["r_m2a"]:L["r_m2a"] + K2, 0:N2],
                  preferred_element_type=f32)
          + jnp.dot(hpc[2:n2 + 2, :], w_ref[L["r_m2b"]:L["r_m2b"] + K2, 0:N2],
                    preferred_element_type=f32)
          + b2)
    c2 = jnp.maximum(c2, 0.0)              # (n2, N2)

    # -- conv3 (2x2, 32->64) + ReLU -------------------------------------------
    c2c = c2.astype(cdt)
    c3 = (jnp.dot(c2c[0:n3, :], w_ref[L["r_m3a"]:L["r_m3a"] + K3, 0:N3],
                  preferred_element_type=f32)
          + jnp.dot(c2c[2:n3 + 2, :], w_ref[L["r_m3b"]:L["r_m3b"] + K3, 0:N3],
                    preferred_element_type=f32)
          + b3)
    c3 = jnp.maximum(c3, 0.0).astype(cdt)  # (n3, N3)

    # -- LSTM gate pre-activation from the conv embedding, still banded over
    #    the global row space (one (ng,N3)x(N3,4HS) dot per conv3 row h); the
    #    NCHW flatten is folded into wg's pre-permuted columns. ---------------
    gsum = jnp.dot(c3[0:ng, :], w_ref[L["r_wg"]:L["r_wg"] + N3, 0:G4],
                   preferred_element_type=f32)
    for h in range(1, H3):
        gsum = gsum + jnp.dot(
            c3[2 * h:2 * h + ng, :],
            w_ref[L["r_wg"] + h * N3:L["r_wg"] + (h + 1) * N3, 0:G4],
            preferred_element_type=f32)    # (ng, 4*HS)

    # gather the one valid gate row per image (row b*S) into a compact block
    for b in range(B):
        g_scr[b:b + 1, :] = gsum[b * S:b * S + 1, :]

    # -- batched LSTM cell (PyTorch gate order i,f,g,o) + Q head --------------
    hx = st_ref[:, 0:HS]
    cx = st_ref[:, HS:2 * HS]
    gates = (g_scr[...] + bl
             + jnp.dot(hx.astype(cdt), w_ref[L["r_whh"]:L["r_whh"] + HS, 0:G4],
                       preferred_element_type=f32))        # (B, 4*HS)

    sg = jax.nn.sigmoid(gates)             # one full-width EUP pass
    i_g = sg[:, 0:HS]
    f_g = sg[:, HS:2 * HS]
    o_g = sg[:, 3 * HS:4 * HS]
    g_g = jnp.tanh(gates[:, 2 * HS:3 * HS])                # tanh only on g gate
    cy = f_g * cx + i_g * g_g
    hy = o_g * jnp.tanh(cy)

    q = (jnp.dot(hy.astype(cdt), w_ref[L["r_wq"]:L["r_wq"] + HS, 0:QW],
                 preferred_element_type=f32) + bq)         # (B, QW), cols >= OD are 0

    # packed lane-dense output slab: [ hy | cy | q(+pad) ]
    out_ref[:, 0:HS] = hy
    out_ref[:, HS:2 * HS] = cy
    out_ref[:, 2 * HS:2 * HS + QW] = q


def _fused_pallas_call(prepped, a0, st, L, B):
    kernel = functools.partial(_fused_kernel, B=B, L=L)
    inputs = (a0, st, prepped["W"], prepped["Bs"])
    out = pl.pallas_call(
        kernel,
        out_shape=jax.ShapeDtypeStruct((B, L["OUTW"]), jnp.float32),
        grid=(1,),
        in_specs=[pl.BlockSpec(v.shape, lambda i: (0, 0)) for v in inputs],
        out_specs=pl.BlockSpec((B, L["OUTW"]), lambda i: (0, 0)),
        scratch_shapes=[pltpu.VMEM((B, L["G4"]), jnp.float32)],
        compiler_params=pltpu.CompilerParams(
            dimension_semantics=("arbitrary",)),
    )(*inputs)
    return out


# ----------------------------------------------------------------------------
# One-time parameter preparation: banded conv matrices, NCHW->(h,w,o) LSTM
# column permutation, bias fusion, and packing into 2 slabs (bf16 weights +
# f32 biases) so the kernel sees only 2 parameter DMAs.
# ----------------------------------------------------------------------------
def _banded_conv_halves(w_pt, w_in, col_base):
    """(O,C,2,2) conv weight -> two banded GEMM matrices (one per height tap),
    each (w_in*C, (w_in-1)*O), implementing the 2x2/stride-1 conv along width."""
    w = np.asarray(w_pt, dtype=np.float32)
    o_ch, c_ch = w.shape[0], w.shape[1]
    w_out = w_in - 1
    mats = np.zeros((2, w_in * c_ch, w_out * o_ch), np.float32)
    for i in range(2):
        for wo in range(w_out):
            base = col_base(wo, o_ch)
            for j in range(2):
                win = wo + j
                mats[i, win * c_ch:(win + 1) * c_ch,
                     base:base + o_ch] += w[:, :, i, j].T
    return mats[0], mats[1]


def prepare_params(params, obs_dim, hidden_size, option_dim,
                   compute_dtype=jnp.bfloat16):
    L = _layout(obs_dim, hidden_size, option_dim)
    K1, N1, K2, N2, K3, N3 = L["K1"], L["N1"], L["K2"], L["N2"], L["K3"], L["N3"]
    HS, OD, G4 = L["HS"], L["OD"], L["G4"]
    O3, H3, W3 = L["O3"], L["H3"], L["W3"]

    Wslab = np.zeros((L["WROWS"], L["LW"]), np.float32)
    Bslab = np.zeros((8, L["LW"]), np.float32)

    # conv1 output columns in (even-w | odd-w) order so the width half of the
    # maxpool is one contiguous max of two column halves inside the kernel.
    col1 = lambda wo, o: ((wo % 2) * L["E1"] + wo // 2) * o
    coln = lambda wo, o: wo * o

    m1a, m1b = _banded_conv_halves(params["conv1_w"], L["W0"], col1)
    m2a, m2b = _banded_conv_halves(params["conv2_w"], L["Wp"], coln)
    m3a, m3b = _banded_conv_halves(params["conv3_w"], L["W2"], coln)

    Wslab[L["r_m1a"]:L["r_m1a"] + K1, 0:N1] = m1a
    Wslab[L["r_m1b"]:L["r_m1b"] + K1, 0:N1] = m1b
    Wslab[L["r_m2a"]:L["r_m2a"] + K2, 0:N2] = m2a
    Wslab[L["r_m2b"]:L["r_m2b"] + K2, 0:N2] = m2b
    Wslab[L["r_m3a"]:L["r_m3a"] + K3, 0:N3] = m3a
    Wslab[L["r_m3b"]:L["r_m3b"] + K3, 0:N3] = m3b

    # LSTM input weights: permute columns from PyTorch's NCHW flatten order
    # (o, h, w) to the kernel's (h, w, o) layout, split per conv3 row h.
    w_ih = np.asarray(params["w_ih"], np.float32)                 # (4*HS, embed)
    wg = np.transpose(w_ih.reshape(4 * HS, O3, H3, W3), (2, 3, 1, 0))
    wg = wg.reshape(H3, W3 * O3, 4 * HS)
    for h in range(H3):
        Wslab[L["r_wg"] + h * N3:L["r_wg"] + (h + 1) * N3, 0:G4] = wg[h]
    Wslab[L["r_whh"]:L["r_whh"] + HS, 0:G4] = np.asarray(params["w_hh"],
                                                         np.float32).T
    Wslab[L["r_wq"]:L["r_wq"] + HS, 0:OD] = np.asarray(params["q_w"],
                                                       np.float32).T

    Bslab[0, 0:N1] = np.tile(np.asarray(params["conv1_b"], np.float32), L["W1"])
    Bslab[1, 0:N2] = np.tile(np.asarray(params["conv2_b"], np.float32), L["W2"])
    Bslab[2, 0:N3] = np.tile(np.asarray(params["conv3_b"], np.float32), L["W3"])
    Bslab[3, 0:G4] = (np.asarray(params["b_ih"], np.float32)
                      + np.asarray(params["b_hh"], np.float32))
    Bslab[4, 0:OD] = np.asarray(params["q_b"], np.float32)

    prepped = {"W": jnp.asarray(Wslab, compute_dtype),
               "Bs": jnp.asarray(Bslab, jnp.float32)}
    return prepped, L


def make_inter_q_forward(L):
    H0, S = L["H0"], L["S"]
    K1, K1p, HS, OD = L["K1"], L["K1p"], L["HS"], L["OD"]

    def forward(prepped, x, hx, cx):
        # x: (H,W,3) or (B,H,W,3) channel-last, as the torch module receives it.
        if x.ndim == 3:
            x = x[None]
        if hx.ndim == 1:
            hx = hx[None]
            cx = cx[None]
        B = x.shape[0]
        # bf16 pre-cast + pad each image to (S, K1p) and stack: (B*S, K1p)
        xr = x.astype(jnp.bfloat16).reshape(B, H0, K1)
        a0 = jnp.pad(xr, ((0, 0), (0, S - H0), (0, K1p - K1)))
        a0 = a0.reshape(B * S, K1p)
        st = jnp.concatenate(
            [hx.astype(jnp.float32), cx.astype(jnp.float32)], axis=1)
        out = _fused_pallas_call(prepped, a0, st, L, B)
        hy = out[:, 0:HS]
        cy = out[:, HS:2 * HS]
        q = out[:, 2 * HS:2 * HS + OD]
        if B == 1:   # replicate torch squeeze semantics
            return q[0], (hy[0], cy[0])
        return q, (hy, cy)

    return jax.jit(forward)


# ----------------------------------------------------------------------------
# Deterministic synthetic parameters (shapes per InterQFunction.__init__,
# kept in the original PyTorch layouts).
# ----------------------------------------------------------------------------
def init_params(obs_dim, hidden_size, option_dim, seed=0):
    n, m = obs_dim[0], obs_dim[1]
    embed = ((n - 1) // 2 - 2) * ((m - 1) // 2 - 2) * 64
    keys = jax.random.split(jax.random.PRNGKey(seed), 12)

    def u(key, shape, fan_in):
        bound = 1.0 / jnp.sqrt(float(fan_in))
        return jax.random.uniform(key, shape, jnp.float32, -bound, bound)

    params = {
        "conv1_w": u(keys[0], (16, 3, 2, 2), 3 * 4),
        "conv1_b": u(keys[1], (16,), 3 * 4),
        "conv2_w": u(keys[2], (32, 16, 2, 2), 16 * 4),
        "conv2_b": u(keys[3], (32,), 16 * 4),
        "conv3_w": u(keys[4], (64, 32, 2, 2), 32 * 4),
        "conv3_b": u(keys[5], (64,), 32 * 4),
        "w_ih": u(keys[6], (4 * hidden_size, embed), hidden_size),
        "w_hh": u(keys[7], (4 * hidden_size, hidden_size), hidden_size),
        "b_ih": u(keys[8], (4 * hidden_size,), hidden_size),
        "b_hh": u(keys[9], (4 * hidden_size,), hidden_size),
        "q_w": u(keys[10], (option_dim, hidden_size), hidden_size),
        "q_b": u(keys[11], (option_dim,), hidden_size),
    }
    return params, embed


# ----------------------------------------------------------------------------
# Pure-JAX reference (mirrors the PyTorch module, f32) for validation.
# ----------------------------------------------------------------------------
def _reference_forward(params, x, hx, cx):
    if x.ndim == 3:
        x = x[None]

    def conv(h, w_pt, bias):
        B, H, W, C = h.shape
        O = w_pt.shape[0]
        Ho, Wo = H - 1, W - 1
        patches = jnp.stack(
            [h[:, i:i + Ho, j:j + Wo, :] for i in range(2) for j in range(2)],
            axis=3).reshape(B * Ho * Wo, 4 * C)
        wmat = jnp.transpose(w_pt, (2, 3, 1, 0)).reshape(4 * C, O)
        out = jnp.maximum(patches @ wmat + bias, 0.0)
        return out.reshape(B, Ho, Wo, O)

    h = conv(x.astype(jnp.float32), params["conv1_w"], params["conv1_b"])
    B, H, W, C = h.shape
    hc = h[:, :(H // 2) * 2, :(W // 2) * 2, :]
    h = jnp.maximum(
        jnp.maximum(hc[:, 0::2, 0::2, :], hc[:, 0::2, 1::2, :]),
        jnp.maximum(hc[:, 1::2, 0::2, :], hc[:, 1::2, 1::2, :]))
    h = conv(h, params["conv2_w"], params["conv2_b"])
    h = conv(h, params["conv3_w"], params["conv3_b"])
    emb = jnp.transpose(h, (0, 3, 1, 2)).reshape(h.shape[0], -1)

    HS = hx.shape[-1]
    gates = (emb @ params["w_ih"].T + hx @ params["w_hh"].T
             + params["b_ih"] + params["b_hh"])
    i_g = jax.nn.sigmoid(gates[:, 0:HS])
    f_g = jax.nn.sigmoid(gates[:, HS:2 * HS])
    g_g = jnp.tanh(gates[:, 2 * HS:3 * HS])
    o_g = jax.nn.sigmoid(gates[:, 3 * HS:4 * HS])
    cy = f_g * cx + i_g * g_g
    hy = o_g * jnp.tanh(cy)
    q = hy @ params["q_w"].T + params["q_b"]
    return q, hy, cy


if __name__ == "__main__":
    # obs_dim = (9, 9, 3) -> image_embedding_size = ((9-1)//2 - 2)**2 * 64 = 256
    obs_dim = (9, 9, 3)
    hidden_size = 32
    option_dim = 4
    batch = 2

    params, embed = init_params(obs_dim, hidden_size, option_dim, seed=0)
    prepped, L = prepare_params(params, obs_dim, hidden_size, option_dim,
                                compute_dtype=jnp.bfloat16)
    forward = make_inter_q_forward(L)

    k1, k2, k3 = jax.random.split(jax.random.PRNGKey(0), 3)
    x = jax.random.uniform(k1, (batch, obs_dim[0], obs_dim[1], 3), jnp.float32)
    hx = jax.random.normal(k2, (batch, hidden_size), jnp.float32) * 0.1
    cx = jax.random.normal(k3, (batch, hidden_size), jnp.float32) * 0.1

    q, (hy, cy) = forward(prepped, x, hx, cx)
    jax.block_until_ready((q, hy, cy))

    assert q.shape == (batch, option_dim)
    assert hy.shape == (batch, hidden_size)
    assert cy.shape == (batch, hidden_size)

    # numerical check against the pure-JAX reference (bf16 MXU operands ->
    # loose-ish tolerance; typical observed error is ~1e-3).
    q_ref, hy_ref, cy_ref = _reference_forward(params, x, hx, cx)
    assert jnp.allclose(q, q_ref, atol=5e-2, rtol=5e-2)
    assert jnp.allclose(hy, hy_ref, atol=5e-2, rtol=5e-2)
    assert jnp.allclose(cy, cy_ref, atol=5e-2, rtol=5e-2)

    # single-observation path (3-D x, 1-D state), mirrors the torch squeeze.
    q1, (hy1, cy1) = forward(prepped, x[0], hx[0], cx[0])
    jax.block_until_ready((q1, hy1, cy1))
    assert q1.shape == (option_dim,)
    assert hy1.shape == (hidden_size,)
    assert jnp.allclose(q1, q_ref[0], atol=5e-2, rtol=5e-2)
    assert jnp.allclose(hy1, hy_ref[0], atol=5e-2, rtol=5e-2)
    assert jnp.allclose(cy1, cy_ref[0], atol=5e-2, rtol=5e-2)

    print("KERNEL_OK")
</pallas_src>

<mosaic_0001>
module attributes {stable_mosaic.version = 11 : i64} {
  func.func @_fused_kernel(%arg0: i32, %arg1: memref<20x32xbf16, #tpu.memory_space<vmem>>, %arg2: memref<2x64xf32, #tpu.memory_space<vmem>>, %arg3: memref<704x128xbf16, #tpu.memory_space<vmem>>, %arg4: memref<8x128xf32, #tpu.memory_space<vmem>>, %arg5: memref<2x128xf32, #tpu.memory_space<vmem>>, %arg6: memref<2x128xf32, #tpu.memory_space<vmem>>) attributes {dimension_semantics = [#tpu.dimension_semantics<arbitrary>], iteration_bounds = array<i64: 1>, scalar_prefetch = 0 : i64, scratch_operands = 1 : i64, tpu.core_type = #tpu.core_type<tc>, window_params = [{pipeline_mode = #tpu.pipeline_mode<synchronous>, transform_indices = @transform_0, window_bounds = array<i64: 20, 32>}, {pipeline_mode = #tpu.pipeline_mode<synchronous>, transform_indices = @transform_1, window_bounds = array<i64: 2, 64>}, {pipeline_mode = #tpu.pipeline_mode<synchronous>, transform_indices = @transform_2, window_bounds = array<i64: 704, 128>}, {pipeline_mode = #tpu.pipeline_mode<synchronous>, transform_indices = @transform_3, window_bounds = array<i64: 8, 128>}, {pipeline_mode = #tpu.pipeline_mode<synchronous>, transform_indices = @transform_4, window_bounds = array<i64: 2, 128>}]} {
    %c0 = arith.constant 0 : index
    %c0_0 = arith.constant 0 : index
    %0 = vector.load %arg4[%c0, %c0_0] : memref<8x128xf32, #tpu.memory_space<vmem>>, vector<1x128xf32>
    %c1 = arith.constant 1 : index
    %c0_1 = arith.constant 0 : index
    %1 = vector.load %arg4[%c1, %c0_1] : memref<8x128xf32, #tpu.memory_space<vmem>>, vector<1x96xf32>
    %c2 = arith.constant 2 : index
    %c0_2 = arith.constant 0 : index
    %2 = vector.load %arg4[%c2, %c0_2] : memref<8x128xf32, #tpu.memory_space<vmem>>, vector<1x128xf32>
    %c3 = arith.constant 3 : index
    %c0_3 = arith.constant 0 : index
    %3 = vector.load %arg4[%c3, %c0_3] : memref<8x128xf32, #tpu.memory_space<vmem>>, vector<1x128xf32>
    %c4 = arith.constant 4 : index
    %c0_4 = arith.constant 0 : index
    %4 = vector.load %arg4[%c4, %c0_4] : memref<8x128xf32, #tpu.memory_space<vmem>>, vector<1x64xf32>
    %c0_5 = arith.constant 0 : index
    %c0_6 = arith.constant 0 : index
    %5 = vector.load %arg1[%c0_5, %c0_6] : memref<20x32xbf16, #tpu.memory_space<vmem>>, vector<18x32xbf16>
    %c0_7 = arith.constant 0 : index
    %c0_8 = arith.constant 0 : index
    %6 = vector.load %arg3[%c0_7, %c0_8] : memref<704x128xbf16, #tpu.memory_space<vmem>>, vector<32x128xbf16>
    %cst = arith.constant dense<0.000000e+00> : vector<18x128xf32>
    %7 = tpu.matmul %5, %6, %cst {dimension_numbers = #tpu.dot_dimension_numbers<[1], [0], [0], [1], [0, 0, 1, 1], [], []>} : vector<18x32xbf16>, vector<32x128xbf16>, vector<18x128xf32> -> vector<18x128xf32>
    %c1_9 = arith.constant 1 : index
    %c0_10 = arith.constant 0 : index
    %8 = vector.load %arg1[%c1_9, %c0_10] : memref<20x32xbf16, #tpu.memory_space<vmem>>, vector<18x32xbf16>
    %c32 = arith.constant 32 : index
    %c0_11 = arith.constant 0 : index
    %9 = vector.load %arg3[%c32, %c0_11] : memref<704x128xbf16, #tpu.memory_space<vmem>>, vector<32x128xbf16>
    %cst_12 = arith.constant dense<0.000000e+00> : vector<18x128xf32>
    %10 = tpu.matmul %8, %9, %cst_12 {dimension_numbers = #tpu.dot_dimension_numbers<[1], [0], [0], [1], [0, 0, 1, 1], [], []>} : vector<18x32xbf16>, vector<32x128xbf16>, vector<18x128xf32> -> vector<18x128xf32>
    %11 = arith.addf %7, %10 : vector<18x128xf32>
    %12 = vector.broadcast %0 : vector<1x128xf32> to vector<18x128xf32>
    %13 = arith.addf %11, %12 : vector<18x128xf32>
    %cst_13 = arith.constant 0.000000e+00 : f32
    %14 = vector.broadcast %cst_13 : f32 to vector<18x128xf32>
    %15 = arith.maximumf %13, %14 : vector<18x128xf32>
    %16 = vector.extract_strided_slice %15 {offsets = [0, 0], sizes = [18, 64], strides = [1, 1]} : vector<18x128xf32> to vector<18x64xf32>
    %17 = vector.extract_strided_slice %15 {offsets = [0, 64], sizes = [18, 64], strides = [1, 1]} : vector<18x128xf32> to vector<18x64xf32>
    %18 = arith.maximumf %16, %17 : vector<18x64xf32>
    %19 = vector.extract_strided_slice %18 {offsets = [0, 0], sizes = [17, 64], strides = [1, 1]} : vector<18x64xf32> to vector<17x64xf32>
    %20 = vector.extract_strided_slice %18 {offsets = [1, 0], sizes = [17, 64], strides = [1, 1]} : vector<18x64xf32> to vector<17x64xf32>
    %21 = arith.maximumf %19, %20 : vector<17x64xf32>
    %22 = arith.truncf %21 : vector<17x64xf32> to vector<17x64xbf16>
    %23 = vector.extract_strided_slice %22 {offsets = [0, 0], sizes = [15, 64], strides = [1, 1]} : vector<17x64xbf16> to vector<15x64xbf16>
    %c64 = arith.constant 64 : index
    %c0_14 = arith.constant 0 : index
    %24 = vector.load %arg3[%c64, %c0_14] : memref<704x128xbf16, #tpu.memory_space<vmem>>, vector<64x96xbf16>
    %cst_15 = arith.constant dense<0.000000e+00> : vector<15x96xf32>
    %25 = tpu.matmul %23, %24, %cst_15 {dimension_numbers = #tpu.dot_dimension_numbers<[1], [0], [0], [1], [0, 0, 1, 1], [], []>} : vector<15x64xbf16>, vector<64x96xbf16>, vector<15x96xf32> -> vector<15x96xf32>
    %26 = vector.extract_strided_slice %22 {offsets = [2, 0], sizes = [15, 64], strides = [1, 1]} : vector<17x64xbf16> to vector<15x64xbf16>
    %c128 = arith.constant 128 : index
    %c0_16 = arith.constant 0 : index
    %27 = vector.load %arg3[%c128, %c0_16] : memref<704x128xbf16, #tpu.memory_space<vmem>>, vector<64x96xbf16>
    %cst_17 = arith.constant dense<0.000000e+00> : vector<15x96xf32>
    %28 = tpu.matmul %26, %27, %cst_17 {dimension_numbers = #tpu.dot_dimension_numbers<[1], [0], [0], [1], [0, 0, 1, 1], [], []>} : vector<15x64xbf16>, vector<64x96xbf16>, vector<15x96xf32> -> vector<15x96xf32>
    %29 = arith.addf %25, %28 : vector<15x96xf32>
    %30 = vector.broadcast %1 : vector<1x96xf32> to vector<15x96xf32>
    %31 = arith.addf %29, %30 : vector<15x96xf32>
    %cst_18 = arith.constant 0.000000e+00 : f32
    %32 = vector.broadcast %cst_18 : f32 to vector<15x96xf32>
    %33 = arith.maximumf %31, %32 : vector<15x96xf32>
    %34 = arith.truncf %33 : vector<15x96xf32> to vector<15x96xbf16>
    %35 = vector.extract_strided_slice %34 {offsets = [0, 0], sizes = [13, 96], strides = [1, 1]} : vector<15x96xbf16> to vector<13x96xbf16>
    %c192 = arith.constant 192 : index
    %c0_19 = arith.constant 0 : index
    %36 = vector.load %arg3[%c192, %c0_19] : memref<704x128xbf16, #tpu.memory_space<vmem>>, vector<96x128xbf16>
    %cst_20 = arith.constant dense<0.000000e+00> : vector<13x128xf32>
    %37 = tpu.matmul %35, %36, %cst_20 {dimension_numbers = #tpu.dot_dimension_numbers<[1], [0], [0], [1], [0, 0, 1, 1], [], []>} : vector<13x96xbf16>, vector<96x128xbf16>, vector<13x128xf32> -> vector<13x128xf32>
    %38 = vector.extract_strided_slice %34 {offsets = [2, 0], sizes = [13, 96], strides = [1, 1]} : vector<15x96xbf16> to vector<13x96xbf16>
    %c288 = arith.constant 288 : index
    %c0_21 = arith.constant 0 : index
    %39 = vector.load %arg3[%c288, %c0_21] : memref<704x128xbf16, #tpu.memory_space<vmem>>, vector<96x128xbf16>
    %cst_22 = arith.constant dense<0.000000e+00> : vector<13x128xf32>
    %40 = tpu.matmul %38, %39, %cst_22 {dimension_numbers = #tpu.dot_dimension_numbers<[1], [0], [0], [1], [0, 0, 1, 1], [], []>} : vector<13x96xbf16>, vector<96x128xbf16>, vector<13x128xf32> -> vector<13x128xf32>
    %41 = arith.addf %37, %40 : vector<13x128xf32>
    %42 = vector.broadcast %2 : vector<1x128xf32> to vector<13x128xf32>
    %43 = arith.addf %41, %42 : vector<13x128xf32>
    %cst_23 = arith.constant 0.000000e+00 : f32
    %44 = vector.broadcast %cst_23 : f32 to vector<13x128xf32>
    %45 = arith.maximumf %43, %44 : vector<13x128xf32>
    %46 = arith.truncf %45 : vector<13x128xf32> to vector<13x128xbf16>
    %47 = vector.extract_strided_slice %46 {offsets = [0, 0], sizes = [11, 128], strides = [1, 1]} : vector<13x128xbf16> to vector<11x128xbf16>
    %c384 = arith.constant 384 : index
    %c0_24 = arith.constant 0 : index
    %48 = vector.load %arg3[%c384, %c0_24] : memref<704x128xbf16, #tpu.memory_space<vmem>>, vector<128x128xbf16>
    %cst_25 = arith.constant dense<0.000000e+00> : vector<11x128xf32>
    %49 = tpu.matmul %47, %48, %cst_25 {dimension_numbers = #tpu.dot_dimension_numbers<[1], [0], [0], [1], [0, 0, 1, 1], [], []>} : vector<11x128xbf16>, vector<128x128xbf16>, vector<11x128xf32> -> vector<11x128xf32>
    %50 = vector.extract_strided_slice %46 {offsets = [2, 0], sizes = [11, 128], strides = [1, 1]} : vector<13x128xbf16> to vector<11x128xbf16>
    %c512 = arith.constant 512 : index
    %c0_26 = arith.constant 0 : index
    %51 = vector.load %arg3[%c512, %c0_26] : memref<704x128xbf16, #tpu.memory_space<vmem>>, vector<128x128xbf16>
    %cst_27 = arith.constant dense<0.000000e+00> : vector<11x128xf32>
    %52 = tpu.matmul %50, %51, %cst_27 {dimension_numbers = #tpu.dot_dimension_numbers<[1], [0], [0], [1], [0, 0, 1, 1], [], []>} : vector<11x128xbf16>, vector<128x128xbf16>, vector<11x128xf32> -> vector<11x128xf32>
    %53 = arith.addf %49, %52 : vector<11x128xf32>
    %54 = vector.extract_strided_slice %53 {offsets = [0, 0], sizes = [1, 128], strides = [1, 1]} : vector<11x128xf32> to vector<1x128xf32>
    %c0_28 = arith.constant 0 : index
    %c0_29 = arith.constant 0 : index
    %55 = vector.load %arg6[%c0_28, %c0_29] : memref<2x128xf32, #tpu.memory_space<vmem>>, vector<1x128xf32>
    tpu.vector_store %arg6[%c0_28, %c0_29], %54 {strides = array<i32>} : memref<2x128xf32, #tpu.memory_space<vmem>>, vector<1x128xf32>,
    %56 = vector.extract_strided_slice %53 {offsets = [10, 0], sizes = [1, 128], strides = [1, 1]} : vector<11x128xf32> to vector<1x128xf32>
    %c1_30 = arith.constant 1 : index
    %c0_31 = arith.constant 0 : index
    %57 = vector.load %arg6[%c1_30, %c0_31] : memref<2x128xf32, #tpu.memory_space<vmem>>, vector<1x128xf32>
    tpu.vector_store %arg6[%c1_30, %c0_31], %56 {strides = array<i32>} : memref<2x128xf32, #tpu.memory_space<vmem>>, vector<1x128xf32>,
    %c0_32 = arith.constant 0 : index
    %c0_33 = arith.constant 0 : index
    %58 = vector.load %arg2[%c0_32, %c0_33] : memref<2x64xf32, #tpu.memory_space<vmem>>, vector<2x32xf32>
    %c0_34 = arith.constant 0 : index
    %c32_35 = arith.constant 32 : index
    %59 = vector.load %arg2[%c0_34, %c32_35] : memref<2x64xf32, #tpu.memory_space<vmem>>, vector<2x32xf32>
    %c0_36 = arith.constant 0 : index
    %c0_37 = arith.constant 0 : index
    %60 = vector.load %arg6[%c0_36, %c0_37] : memref<2x128xf32, #tpu.memory_space<vmem>>, vector<2x128xf32>
    %61 = vector.broadcast %3 : vector<1x128xf32> to vector<2x128xf32>
    %62 = arith.addf %60, %61 : vector<2x128xf32>
    %63 = arith.truncf %58 : vector<2x32xf32> to vector<2x32xbf16>
    %c640 = arith.constant 640 : index
    %c0_38 = arith.constant 0 : index
    %64 = vector.load %arg3[%c640, %c0_38] : memref<704x128xbf16, #tpu.memory_space<vmem>>, vector<32x128xbf16>
    %cst_39 = arith.constant dense<0.000000e+00> : vector<2x128xf32>
    %65 = tpu.matmul %63, %64, %cst_39 {dimension_numbers = #tpu.dot_dimension_numbers<[1], [0], [0], [1], [0, 0, 1, 1], [], []>} : vector<2x32xbf16>, vector<32x128xbf16>, vector<2x128xf32> -> vector<2x128xf32>
    %66 = arith.addf %62, %65 : vector<2x128xf32>
    %67 = arith.negf %66 : vector<2x128xf32>
    %68 = math.exp %67 : vector<2x128xf32>
    %cst_40 = arith.constant 1.000000e+00 : f32
    %69 = vector.broadcast %cst_40 : f32 to vector<2x128xf32>
    %70 = arith.addf %69, %68 : vector<2x128xf32>
    %71 = arith.divf %69, %70 : vector<2x128xf32>
    %72 = vector.extract_strided_slice %71 {offsets = [0, 0], sizes = [2, 32], strides = [1, 1]} : vector<2x128xf32> to vector<2x32xf32>
    %73 = vector.extract_strided_slice %71 {offsets = [0, 32], sizes = [2, 32], strides = [1, 1]} : vector<2x128xf32> to vector<2x32xf32>
    %74 = vector.extract_strided_slice %71 {offsets = [0, 96], sizes = [2, 32], strides = [1, 1]} : vector<2x128xf32> to vector<2x32xf32>
    %75 = vector.extract_strided_slice %66 {offsets = [0, 64], sizes = [2, 32], strides = [1, 1]} : vector<2x128xf32> to vector<2x32xf32>
    %76 = math.tanh %75 : vector<2x32xf32>
    %77 = arith.mulf %73, %59 : vector<2x32xf32>
    %78 = arith.mulf %72, %76 : vector<2x32xf32>
    %79 = arith.addf %77, %78 : vector<2x32xf32>
    %80 = math.tanh %79 : vector<2x32xf32>
    %81 = arith.mulf %74, %80 : vector<2x32xf32>
    %82 = arith.truncf %81 : vector<2x32xf32> to vector<2x32xbf16>
    %c672 = arith.constant 672 : index
    %c0_41 = arith.constant 0 : index
    %83 = vector.load %arg3[%c672, %c0_41] : memref<704x128xbf16, #tpu.memory_space<vmem>>, vector<32x64xbf16>
    %cst_42 = arith.constant dense<0.000000e+00> : vector<2x64xf32>
    %84 = tpu.matmul %82, %83, %cst_42 {dimension_numbers = #tpu.dot_dimension_numbers<[1], [0], [0], [1], [0, 0, 1, 1], [], []>} : vector<2x32xbf16>, vector<32x64xbf16>, vector<2x64xf32> -> vector<2x64xf32>
    %85 = vector.broadcast %4 : vector<1x64xf32> to vector<2x64xf32>
    %86 = arith.addf %84, %85 : vector<2x64xf32>
    %c0_43 = arith.constant 0 : index
    %c0_44 = arith.constant 0 : index
    %87 = vector.load %arg5[%c0_43, %c0_44] : memref<2x128xf32, #tpu.memory_space<vmem>>, vector<2x32xf32>
    tpu.vector_store %arg5[%c0_43, %c0_44], %81 {strides = array<i32>} : memref<2x128xf32, #tpu.memory_space<vmem>>, vector<2x32xf32>,
    %c0_45 = arith.constant 0 : index
    %c32_46 = arith.constant 32 : index
    %88 = vector.load %arg5[%c0_45, %c32_46] : memref<2x128xf32, #tpu.memory_space<vmem>>, vector<2x32xf32>
    tpu.vector_store %arg5[%c0_45, %c32_46], %79 {strides = array<i32>} : memref<2x128xf32, #tpu.memory_space<vmem>>, vector<2x32xf32>,
    %c0_47 = arith.constant 0 : index
    %c64_48 = arith.constant 64 : index
    %89 = vector.load %arg5[%c0_47, %c64_48] : memref<2x128xf32, #tpu.memory_space<vmem>>, vector<2x64xf32>
    tpu.vector_store %arg5[%c0_47, %c64_48], %86 {strides = array<i32>} : memref<2x128xf32, #tpu.memory_space<vmem>>, vector<2x64xf32>,
    return
  }
  func.func @transform_0(%arg0: i32) -> (i32, i32) {
    %c0_i32 = arith.constant 0 : i32
    %c0_i32_0 = arith.constant 0 : i32
    %c0_i32_1 = arith.constant 0 : i32
    return %c0_i32, %c0_i32_0 : i32, i32
  }
  func.func @transform_1(%arg0: i32) -> (i32, i32) {
    %c0_i32 = arith.constant 0 : i32
    %c0_i32_0 = arith.constant 0 : i32
    %c0_i32_1 = arith.constant 0 : i32
    return %c0_i32, %c0_i32_0 : i32, i32
  }
  func.func @transform_2(%arg0: i32) -> (i32, i32) {
    %c0_i32 = arith.constant 0 : i32
    %c0_i32_0 = arith.constant 0 : i32
    %c0_i32_1 = arith.constant 0 : i32
    return %c0_i32, %c0_i32_0 : i32, i32
  }
  func.func @transform_3(%arg0: i32) -> (i32, i32) {
    %c0_i32 = arith.constant 0 : i32
    %c0_i32_0 = arith.constant 0 : i32
    %c0_i32_1 = arith.constant 0 : i32
    return %c0_i32, %c0_i32_0 : i32, i32
  }
  func.func @transform_4(%arg0: i32) -> (i32, i32) {
    %c0_i32 = arith.constant 0 : i32
    %c0_i32_0 = arith.constant 0 : i32
    %c0_i32_1 = arith.constant 0 : i32
    return %c0_i32, %c0_i32_0 : i32, i32
  }
}

</mosaic_0001>

<llo_original>
// kernel: forward.1
$region0: #{forward.1}
  #allocation0 [shape = 'u32[]', space=smem, size = 0x4, offset = 0x4, fixed_abs, tag = 'smem constant byte address 0x4 - core index']
  #allocation1 [shape = 'u32[72,128]{1,0:T(1,128)}', space=vmem, size = 0x9000, scoped, tag = 'internal scratch']
  #allocation2 [shape = 'f32[2,128]{1,0:T(2,128)}', space=vmem, size = 0x400, scoped, tag = 'scratch operand']
  %s0 = inlined_call_operand.vmem [shape: bf16[20,32], index: 0, kind: input, shape index: {}]
  %s1 = inlined_call_operand.vmem [shape: f32[2,64], index: 1, kind: input, shape index: {}]
  %s2 = inlined_call_operand.hbm [shape: bf16[704,128], index: 2, kind: input, shape index: {}]
  %s3 = inlined_call_operand.vmem [shape: f32[8,128], index: 3, kind: input, shape index: {}]
  %s4 = inlined_call_operand.vmem [shape: f32[2,128], index: 4, kind: output, shape index: {}]
  %s5 = sld [smem:[#allocation0]]
  $region30: #{forward.1} parent=0
    _
  %s7 = ssub.s32 1, %s5
  %s8 = scalar_select 0, %s7, %s5
  $region1: #{forward.1} parent=0
    #allocation3 [shape = 'u8[180224]{0}', space=vmem, size = 0x2c000, scoped, tag = 'input window, operand 2, single buffered']
    #allocation4 [shape = 's32[1]{0}', space=sflag, size = 0x4, scoped, tag = 'scoped memory for forward.1']
    %9 = vsyncpa [#allocation4], 0
    // Predicated region
    $region2: #{forward.1} parent=1 // pred_check
      _
    $region3: #{forward.1} parent=1 // pred_check_branch
      %11 = sbr.rel (0) target = $region5
    $region4: #{forward.1} parent=1 // pred_region
      _
    $region5: #{forward.1} parent=1 // pred_fallthru
      _
    // Predicated region
    $region6: #{forward.1} parent=1 // pred_check
      _
    $region7: #{forward.1} parent=1 // pred_check_branch
      %13 = sbr.rel (0) target = $region9
    $region8: #{forward.1} parent=1 // pred_region
      _
    $region9: #{forward.1} parent=1 // pred_fallthru
      _
    // Predicated region
    $region10: #{forward.1} parent=1 // pred_check
      _
    $region11: #{forward.1} parent=1 // pred_check_branch
      %15 = sbr.rel (0) target = $region13
    $region12: #{forward.1} parent=1 // pred_region
      %17 = vsyncadd [#allocation4], 0
      %s18 = sshll.u32 %s2, 4
      %s19 = int_to_ptr.hbm [resolvable:$true] %s18
      %s20 = sshll.u32 [#allocation3], 4
      %s21 = int_to_ptr.vmem [resolvable:$true] %s20
      %26 = dma.hbm_to_vmem [thread:$0]  %s19, 5632, %s21, [#allocation4], 64, 64, 4
    $region13: #{forward.1} parent=1 // pred_fallthru
      _
    // Predicated region
    $region14: #{forward.1} parent=1 // pred_check
      _
    $region15: #{forward.1} parent=1 // pred_check_branch
      %28 = sbr.rel (0) target = $region17
    $region16: #{forward.1} parent=1 // pred_region
      _
    $region17: #{forward.1} parent=1 // pred_fallthru
      _
    // Predicated region
    $region18: #{forward.1} parent=1 // pred_check
      _
    $region19: #{forward.1} parent=1 // pred_check_branch
      %30 = sbr.rel (0) target = $region21
    $region20: #{forward.1} parent=1 // pred_region
      %32 = dma.done [#allocation4], 5632
    $region21: #{forward.1} parent=1 // pred_fallthru
      _
    %v34 = vld [vmem:[%s3] sm:$0x1]
    %v35 = vld [vmem:[%s3 + $0x1] sm:$0x1]
    %v36 = vld [vmem:[%s3 + $0x2] sm:$0x1]
    %v37 = vld [vmem:[%s3 + $0x3] sm:$0x1]
    %v38 = vld [vmem:[%s3 + $0x4] sm:$0x1]
    %v39 = vld [vmem:[%s0] sm:$0xf]
    %v40 = vld [vmem:[%s0 + $0x4] sm:$0xf]
    %v41 = vld [vmem:[%s0 + $0x8] sm:$0x1]
    %v42 = vld [vmem:[#allocation3] sm:$0xf]
    %v43 = vld [vmem:[#allocation3 + $0x4] sm:$0xf]
    %v44 = vld [vmem:[#allocation3 + $0x8] sm:$0xf]
    %v45 = vld [vmem:[#allocation3 + $0xc] sm:$0xf]
    %v46 = vld [vmem:[%s0 + $0x8] sm:$0x3]
    %v47 = vld [vmem:[#allocation3 + $0x10] sm:$0xf]
    %v48 = vld [vmem:[#allocation3 + $0x14] sm:$0xf]
    %v49 = vld [vmem:[#allocation3 + $0x18] sm:$0xf]
    %v50 = vld [vmem:[#allocation3 + $0x1c] sm:$0xf]
    %v54 = vunpack.c.l.b16 %v39
    %v55 = vunpack.c.l.b16 %v40
    %v56 = vunpack.c.l.b16 %v46
    %v57 = vpack.c.b16 %v55, %v54
    %v58 = vpack.c.b16 %v56, %v56
    %vm59 = vsmask.f32 7424
    %v61 = vshrl.u32 %v57, 16
    %v63 = vshll.u32 %v57, 16
    %v65 = vrot.slane %v63, 1
    %v66 = vor.u32 %v61, %v65
    %v68 = vshll.u32 %v58, 16
    %v70 = vrot.slane %v68, 1
    %v71 = vsel %vm59, %v66, %v70
    %v72 = vshrl.u32 %v58, 16
    %v74 = vor.u32 %v72, %v70
    %v79 = vunpack.c.l.b16 %v47
    %v80 = vunpack.c.l.b16 %v48
    %v81 = vunpack.c.l.b16 %v49
    %v82 = vunpack.c.l.b16 %v50
    %v83 = vpack.c.b16 %v80, %v79
    %v84 = vpack.c.b16 %v82, %v81
    %vm87 = vcmask 261120
    %v89 = vsel %vm87, %v71, 0
    %v92 = vsel %vm87, %v74, 0
    %94 = vmatpush.bf16.msra.mxu0 0
    %95 = vmatpush.bf16.msra.mxu0 0
    %96 = vmatpush.bf16.msra.mxu0 0
    %97 = vmatpush.bf16.msra.mxu0 0
    %98 = vmatpush.bf16.msra.mxu0 0
    %99 = vmatpush.bf16.msra.mxu0 0
    %100 = vmatpush.bf16.msra.mxu0 %v84
    %101 = vmatpush.bf16.msra.mxu0 %v83
    %102 = vmatmul.bf16.gmra.mxu0 %v89
    %v103 = vpop.f32.mrf.mxu0
    %v104 = vadd.f32 0.0, %v103
    %v105 = vpop.f32.mrf.mxu0
    %v106 = vadd.f32 0.0, %v105
    %107 = vmatmul.bf16.gmra.mxu0 %v92
    %v108 = vpop.f32.mrf.mxu0
    %v109 = vadd.f32 0.0, %v108
    %v110 = vpop.f32.mrf.mxu0
    %111 = vdwg.mxu0
    %v113 = vunpack.c.l.b16 %v41
    %v114 = vpack.c.b16 %v113, %v113
    %v119 = vunpack.c.l.b16 %v42
    %v120 = vunpack.c.l.b16 %v43
    %v121 = vunpack.c.l.b16 %v44
    %v122 = vunpack.c.l.b16 %v45
    %v123 = vpack.c.b16 %v120, %v119
    %v124 = vpack.c.b16 %v122, %v121
    %v127 = vsel %vm87, %v57, 0
    %v130 = vsel %vm87, %v114, 0
    %132 = vmatpush.bf16.msra.mxu0 0
    %133 = vmatpush.bf16.msra.mxu0 0
    %134 = vmatpush.bf16.msra.mxu0 0
    %135 = vmatpush.bf16.msra.mxu0 0
    %136 = vmatpush.bf16.msra.mxu0 0
    %137 = vmatpush.bf16.msra.mxu0 0
    %138 = vmatpush.bf16.msra.mxu0 %v124
    %139 = vmatpush.bf16.msra.mxu0 %v123
    %140 = vmatmul.bf16.gmra.mxu0 %v127
    %v141 = vpop.f32.mrf.mxu0
    %v142 = vadd.f32 %v104, %v141
    %v143 = vpop.f32.mrf.mxu0
    %v144 = vadd.f32 %v106, %v143
    %145 = vmatmul.bf16.gmra.mxu0 %v130
    %v146 = vpop.f32.mrf.mxu0
    %v147 = vadd.f32 %v109, %v146
    %v148 = vpop.f32.mrf.mxu0
    %149 = vdwg.mxu0
    %v150 = vperm.slane %v34, 0
    %v151 = vadd.f32 %v142, %v150
    %v152 = vadd.f32 %v144, %v150
    %v153 = vadd.f32 %v147, %v150
    %v154 = vmax.f32 %v151, 0.0
    %v155 = vmax.f32 %v152, 0.0
    %v156 = vmax.f32 %v153, 0.0
    %160 = vrot.lane.b32.xlu0 %v154, 64
    %v161 = vpop.permute.xlu0 %160
    %162 = vrot.lane.b32.xlu0 %v155, 64
    %v163 = vpop.permute.xlu0 %162
    %164 = vrot.lane.b32.xlu0 %v156, 64
    %v165 = vpop.permute.xlu0 %164
    %v169 = vmax.f32 %v154, %v161
    %v170 = vmax.f32 %v155, %v163
    %v171 = vmax.f32 %v156, %v165
    %vm175 = vcmask 1046528
    %v176 = vrot.slane %v169, 1
    %v177 = vrot.slane %v170, 1
    %v178 = vsel %vm175, %v176, %v177
    %v179 = vrot.slane %v171, 1
    %v180 = vsel %vm175, %v177, %v179
    %v184 = vmax.f32 %v169, %v178
    %v185 = vmax.f32 %v170, %v180
    %v186 = vmax.f32 %v171, %v179
    %v187 = vpack.c.bf16 %v184, %v184
    %v188 = vpack.c.bf16 %v185, %v185
    %v189 = vpack.c.bf16 %v186, %v186
    %v190 = vld [vmem:[#allocation3 + $0x20] sm:$0xf]
    %v191 = vld [vmem:[#allocation3 + $0x24] sm:$0xf]
    %v192 = vld [vmem:[#allocation3 + $0x28] sm:$0xf]
    %v193 = vld [vmem:[#allocation3 + $0x2c] sm:$0xf]
    %v194 = vld [vmem:[#allocation3 + $0x30] sm:$0xf]
    %v195 = vld [vmem:[#allocation3 + $0x34] sm:$0xf]
    %v196 = vld [vmem:[#allocation3 + $0x38] sm:$0xf]
    %v197 = vld [vmem:[#allocation3 + $0x3c] sm:$0xf]
    %v198 = vld [vmem:[#allocation3 + $0x40] sm:$0xf]
    %v199 = vld [vmem:[#allocation3 + $0x44] sm:$0xf]
    %v200 = vld [vmem:[#allocation3 + $0x48] sm:$0xf]
    %v201 = vld [vmem:[#allocation3 + $0x4c] sm:$0xf]
    %v202 = vld [vmem:[#allocation3 + $0x50] sm:$0xf]
    %v203 = vld [vmem:[#allocation3 + $0x54] sm:$0xf]
    %v204 = vld [vmem:[#allocation3 + $0x58] sm:$0xf]
    %v205 = vld [vmem:[#allocation3 + $0x5c] sm:$0xf]
    %v209 = vunpack.c.l.b16 %v187
    %v210 = vunpack.c.l.b16 %v188
    %v211 = vunpack.c.l.b16 %v189
    %v212 = vpack.c.b16 %v210, %v209
    %v213 = vpack.c.b16 %v211, %v211
    %vm214 = vcmask 1046528
    %v215 = vrot.slane %v212, 1
    %v216 = vrot.slane %v213, 1
    %v217 = vsel %vm214, %v215, %v216
    %v226 = vunpack.c.l.b16 %v198
    %v227 = vunpack.c.l.b16 %v199
    %v228 = vunpack.c.l.b16 %v200
    %v229 = vunpack.c.l.b16 %v201
    %v230 = vunpack.c.l.b16 %v202
    %v231 = vunpack.c.l.b16 %v203
    %v232 = vunpack.c.l.b16 %v204
    %v233 = vunpack.c.l.b16 %v205
    %v234 = vpack.c.b16 %v227, %v226
    %v235 = vpack.c.b16 %v229, %v228
    %v236 = vpack.c.b16 %v231, %v230
    %v237 = vpack.c.b16 %v233, %v232
    %vm242 = vcmask 523264
    %v244 = vsel %vm242, %v217, 0
    %246 = vmatpush.bf16.msra.mxu0 0
    %247 = vmatpush.bf16.msra.mxu0 0
    %248 = vmatpush.bf16.msra.mxu0 0
    %249 = vmatpush.bf16.msra.mxu0 0
    %250 = vmatpush.bf16.msra.mxu0 %v237
    %251 = vmatpush.bf16.msra.mxu0 %v236
    %252 = vmatpush.bf16.msra.mxu0 %v235
    %253 = vmatpush.bf16.msra.mxu0 %v234
    %254 = vmatmul.bf16.gmra.mxu0 %v244
    %v255 = vpop.f32.mrf.mxu0
    %v256 = vadd.f32 0.0, %v255
    %v257 = vpop.f32.mrf.mxu0
    %v258 = vadd.f32 0.0, %v257
    %259 = vdwg.mxu0
    %v268 = vunpack.c.l.b16 %v190
    %v269 = vunpack.c.l.b16 %v191
    %v270 = vunpack.c.l.b16 %v192
    %v271 = vunpack.c.l.b16 %v193
    %v272 = vunpack.c.l.b16 %v194
    %v273 = vunpack.c.l.b16 %v195
    %v274 = vunpack.c.l.b16 %v196
    %v275 = vunpack.c.l.b16 %v197
    %v276 = vpack.c.b16 %v269, %v268
    %v277 = vpack.c.b16 %v271, %v270
    %v278 = vpack.c.b16 %v273, %v272
    %v279 = vpack.c.b16 %v275, %v274
    %v285 = vsel %vm242, %v212, 0
    %287 = vmatpush.bf16.msra.mxu0 0
    %288 = vmatpush.bf16.msra.mxu0 0
    %289 = vmatpush.bf16.msra.mxu0 0
    %290 = vmatpush.bf16.msra.mxu0 0
    %291 = vmatpush.bf16.msra.mxu0 %v279
    %292 = vmatpush.bf16.msra.mxu0 %v278
    %293 = vmatpush.bf16.msra.mxu0 %v277
    %294 = vmatpush.bf16.msra.mxu0 %v276
    %295 = vmatmul.bf16.gmra.mxu0 %v285
    %v296 = vpop.f32.mrf.mxu0
    %v297 = vadd.f32 %v256, %v296
    %v298 = vpop.f32.mrf.mxu0
    %v299 = vadd.f32 %v258, %v298
    %300 = vdwg.mxu0
    %v301 = vperm.slane %v35, 0
    %v302 = vadd.f32 %v297, %v301
    %v303 = vadd.f32 %v299, %v301
    %v304 = vmax.f32 %v302, 0.0
    %v305 = vmax.f32 %v303, 0.0
    %v306 = vpack.c.bf16 %v304, %v304
    %v307 = vpack.c.bf16 %v305, %v305
    %v308 = vld [vmem:[#allocation3 + $0x60] sm:$0xf]
    %v309 = vld [vmem:[#allocation3 + $0x64] sm:$0xf]
    %v310 = vld [vmem:[#allocation3 + $0x68] sm:$0xf]
    %v311 = vld [vmem:[#allocation3 + $0x6c] sm:$0xf]
    %v312 = vld [vmem:[#allocation3 + $0x70] sm:$0xf]
    %v313 = vld [vmem:[#allocation3 + $0x74] sm:$0xf]
    %v314 = vld [vmem:[#allocation3 + $0x78] sm:$0xf]
    %v315 = vld [vmem:[#allocation3 + $0x7c] sm:$0xf]
    %v316 = vld [vmem:[#allocation3 + $0x80] sm:$0xf]
    %v317 = vld [vmem:[#allocation3 + $0x84] sm:$0xf]
    %v318 = vld [vmem:[#allocation3 + $0x88] sm:$0xf]
    %v319 = vld [vmem:[#allocation3 + $0x8c] sm:$0xf]
    %v320 = vld [vmem:[#allocation3 + $0x90] sm:$0xf]
    %v321 = vld [vmem:[#allocation3 + $0x94] sm:$0xf]
    %v322 = vld [vmem:[#allocation3 + $0x98] sm:$0xf]
    %v323 = vld [vmem:[#allocation3 + $0x9c] sm:$0xf]
    %v324 = vld [vmem:[#allocation3 + $0xa0] sm:$0xf]
    %v325 = vld [vmem:[#allocation3 + $0xa4] sm:$0xf]
    %v326 = vld [vmem:[#allocation3 + $0xa8] sm:$0xf]
    %v327 = vld [vmem:[#allocation3 + $0xac] sm:$0xf]
    %v328 = vld [vmem:[#allocation3 + $0xb0] sm:$0xf]
    %v329 = vld [vmem:[#allocation3 + $0xb4] sm:$0xf]
    %v330 = vld [vmem:[#allocation3 + $0xb8] sm:$0xf]
    %v331 = vld [vmem:[#allocation3 + $0xbc] sm:$0xf]
    %v334 = vunpack.c.l.b16 %v306
    %v335 = vunpack.c.l.b16 %v307
    %v336 = vpack.c.b16 %v335, %v334
    %v337 = vrot.slane %v336, 1
    %v350 = vunpack.c.l.b16 %v320
    %v351 = vunpack.c.l.b16 %v321
    %v352 = vunpack.c.l.b16 %v322
    %v353 = vunpack.c.l.b16 %v323
    %v354 = vunpack.c.l.b16 %v324
    %v355 = vunpack.c.l.b16 %v325
    %v356 = vunpack.c.l.b16 %v326
    %v357 = vunpack.c.l.b16 %v327
    %v358 = vunpack.c.l.b16 %v328
    %v359 = vunpack.c.l.b16 %v329
    %v360 = vunpack.c.l.b16 %v330
    %v361 = vunpack.c.l.b16 %v331
    %v362 = vpack.c.b16 %v351, %v350
    %v363 = vpack.c.b16 %v353, %v352
    %v364 = vpack.c.b16 %v355, %v354
    %v365 = vpack.c.b16 %v357, %v356
    %v366 = vpack.c.b16 %v359, %v358
    %v367 = vpack.c.b16 %v361, %v360
    %vm374 = vcmask 785408
    %v376 = vsel %vm374, %v337, 0
    %378 = vmatpush.bf16.msra.mxu0 0
    %379 = vmatpush.bf16.msra.mxu0 0
    %380 = vmatpush.bf16.msra.mxu0 %v367
    %381 = vmatpush.bf16.msra.mxu0 %v366
    %382 = vmatpush.bf16.msra.mxu0 %v365
    %383 = vmatpush.bf16.msra.mxu0 %v364
    %384 = vmatpush.bf16.msra.mxu0 %v363
    %385 = vmatpush.bf16.msra.mxu0 %v362
    %386 = vmatmul.bf16.gmra.mxu0 %v376
    %v387 = vpop.f32.mrf.mxu0
    %v388 = vadd.f32 0.0, %v387
    %v389 = vpop.f32.mrf.mxu0
    %v390 = vadd.f32 0.0, %v389
    %391 = vdwg.mxu0
    %v404 = vunpack.c.l.b16 %v308
    %v405 = vunpack.c.l.b16 %v309
    %v406 = vunpack.c.l.b16 %v310
    %v407 = vunpack.c.l.b16 %v311
    %v408 = vunpack.c.l.b16 %v312
    %v409 = vunpack.c.l.b16 %v313
    %v410 = vunpack.c.l.b16 %v314
    %v411 = vunpack.c.l.b16 %v315
    %v412 = vunpack.c.l.b16 %v316
    %v413 = vunpack.c.l.b16 %v317
    %v414 = vunpack.c.l.b16 %v318
    %v415 = vunpack.c.l.b16 %v319
    %v416 = vpack.c.b16 %v405, %v404
    %v417 = vpack.c.b16 %v407, %v406
    %v418 = vpack.c.b16 %v409, %v408
    %v419 = vpack.c.b16 %v411, %v410
    %v420 = vpack.c.b16 %v413, %v412
    %v421 = vpack.c.b16 %v415, %v414
    %v429 = vsel %vm374, %v336, 0
    %431 = vmatpush.bf16.msra.mxu0 0
    %432 = vmatpush.bf16.msra.mxu0 0
    %433 = vmatpush.bf16.msra.mxu0 %v421
    %434 = vmatpush.bf16.msra.mxu0 %v420
    %435 = vmatpush.bf16.msra.mxu0 %v419
    %436 = vmatpush.bf16.msra.mxu0 %v418
    %437 = vmatpush.bf16.msra.mxu0 %v417
    %438 = vmatpush.bf16.msra.mxu0 %v416
    %439 = vmatmul.bf16.gmra.mxu0 %v429
    %v440 = vpop.f32.mrf.mxu0
    %v441 = vadd.f32 %v388, %v440
    %v442 = vpop.f32.mrf.mxu0
    %v443 = vadd.f32 %v390, %v442
    %444 = vdwg.mxu0
    %v445 = vperm.slane %v36, 0
    %v446 = vadd.f32 %v441, %v445
    %v447 = vadd.f32 %v443, %v445
    %v448 = vmax.f32 %v446, 0.0
    %v449 = vmax.f32 %v447, 0.0
    %v450 = vpack.c.bf16 %v448, %v448
    %v451 = vpack.c.bf16 %v449, %v449
    %v452 = vld [vmem:[#allocation3 + $0xc0] sm:$0xf]
    %v453 = vld [vmem:[#allocation3 + $0xc4] sm:$0xf]
    %v454 = vld [vmem:[#allocation3 + $0xc8] sm:$0xf]
    %v455 = vld [vmem:[#allocation3 + $0xcc] sm:$0xf]
    %v456 = vld [vmem:[#allocation3 + $0xd0] sm:$0xf]
    %v457 = vld [vmem:[#allocation3 + $0xd4] sm:$0xf]
    %v458 = vld [vmem:[#allocation3 + $0xd8] sm:$0xf]
    %v459 = vld [vmem:[#allocation3 + $0xdc] sm:$0xf]
    %v460 = vld [vmem:[#allocation3 + $0xe0] sm:$0xf]
    %v461 = vld [vmem:[#allocation3 + $0xe4] sm:$0xf]
    %v462 = vld [vmem:[#allocation3 + $0xe8] sm:$0xf]
    %v463 = vld [vmem:[#allocation3 + $0xec] sm:$0xf]
    %v464 = vld [vmem:[#allocation3 + $0xf0] sm:$0xf]
    %v465 = vld [vmem:[#allocation3 + $0xf4] sm:$0xf]
    %v466 = vld [vmem:[#allocation3 + $0xf8] sm:$0xf]
    %v467 = vld [vmem:[#allocation3 + $0xfc] sm:$0xf]
    %v468 = vld [vmem:[#allocation3 + $0x100] sm:$0xf]
    %v469 = vld [vmem:[#allocation3 + $0x104] sm:$0xf]
    %v470 = vld [vmem:[#allocation3 + $0x108] sm:$0xf]
    %v471 = vld [vmem:[#allocation3 + $0x10c] sm:$0xf]
    %v472 = vld [vmem:[#allocation3 + $0x110] sm:$0xf]
    %v473 = vld [vmem:[#allocation3 + $0x114] sm:$0xf]
    %v474 = vld [vmem:[#allocation3 + $0x118] sm:$0xf]
    %v475 = vld [vmem:[#allocation3 + $0x11c] sm:$0xf]
    %v476 = vld [vmem:[#allocation3 + $0x120] sm:$0xf]
    %v477 = vld [vmem:[#allocation3 + $0x124] sm:$0xf]
    %v478 = vld [vmem:[#allocation3 + $0x128] sm:$0xf]
    %v479 = vld [vmem:[#allocation3 + $0x12c] sm:$0xf]
    %v480 = vld [vmem:[#allocation3 + $0x130] sm:$0xf]
    %v481 = vld [vmem:[#allocation3 + $0x134] sm:$0xf]
    %v482 = vld [vmem:[#allocation3 + $0x138] sm:$0xf]
    %v483 = vld [vmem:[#allocation3 + $0x13c] sm:$0xf]
    %v486 = vunpack.c.l.b16 %v450
    %v487 = vunpack.c.l.b16 %v451
    %v488 = vpack.c.b16 %v487, %v486
    %v489 = vrot.slane %v488, 1
    %v507 = vunpack.c.l.b16 %v468
    %v508 = vunpack.c.l.b16 %v469
    %v509 = vunpack.c.l.b16 %v470
    %v510 = vunpack.c.l.b16 %v471
    %v511 = vunpack.c.l.b16 %v472
    %v512 = vunpack.c.l.b16 %v473
    %v513 = vunpack.c.l.b16 %v474
    %v514 = vunpack.c.l.b16 %v475
    %v515 = vunpack.c.l.b16 %v476
    %v516 = vunpack.c.l.b16 %v477
    %v517 = vunpack.c.l.b16 %v478
    %v518 = vunpack.c.l.b16 %v479
    %v519 = vunpack.c.l.b16 %v480
    %v520 = vunpack.c.l.b16 %v481
    %v521 = vunpack.c.l.b16 %v482
    %v522 = vunpack.c.l.b16 %v483
    %v523 = vpack.c.b16 %v508, %v507
    %v524 = vpack.c.b16 %v510, %v509
    %v525 = vpack.c.b16 %v512, %v511
    %v526 = vpack.c.b16 %v514, %v513
    %v527 = vpack.c.b16 %v516, %v515
    %v528 = vpack.c.b16 %v518, %v517
    %v529 = vpack.c.b16 %v520, %v519
    %v530 = vpack.c.b16 %v522, %v521
    %539 = vmatpush.bf16.msra.mxu0 %v530
    %540 = vmatpush.bf16.msra.mxu0 %v529
    %541 = vmatpush.bf16.msra.mxu0 %v528
    %542 = vmatpush.bf16.msra.mxu0 %v527
    %543 = vmatpush.bf16.msra.mxu0 %v526
    %544 = vmatpush.bf16.msra.mxu0 %v525
    %545 = vmatpush.bf16.msra.mxu0 %v524
    %546 = vmatpush.bf16.msra.mxu0 %v523
    %547 = vmatmul.bf16.gmra.mxu0 %v489
    %v548 = vpop.f32.mrf.mxu0
    %v549 = vadd.f32 0.0, %v548
    %v550 = vpop.f32.mrf.mxu0
    %v551 = vadd.f32 0.0, %v550
    %552 = vdwg.mxu0
    %v570 = vunpack.c.l.b16 %v452
    %v571 = vunpack.c.l.b16 %v453
    %v572 = vunpack.c.l.b16 %v454
    %v573 = vunpack.c.l.b16 %v455
    %v574 = vunpack.c.l.b16 %v456
    %v575 = vunpack.c.l.b16 %v457
    %v576 = vunpack.c.l.b16 %v458
    %v577 = vunpack.c.l.b16 %v459
    %v578 = vunpack.c.l.b16 %v460
    %v579 = vunpack.c.l.b16 %v461
    %v580 = vunpack.c.l.b16 %v462
    %v581 = vunpack.c.l.b16 %v463
    %v582 = vunpack.c.l.b16 %v464
    %v583 = vunpack.c.l.b16 %v465
    %v584 = vunpack.c.l.b16 %v466
    %v585 = vunpack.c.l.b16 %v467
    %v586 = vpack.c.b16 %v571, %v570
    %v587 = vpack.c.b16 %v573, %v572
    %v588 = vpack.c.b16 %v575, %v574
    %v589 = vpack.c.b16 %v577, %v576
    %v590 = vpack.c.b16 %v579, %v578
    %v591 = vpack.c.b16 %v581, %v580
    %v592 = vpack.c.b16 %v583, %v582
    %v593 = vpack.c.b16 %v585, %v584
    %602 = vmatpush.bf16.msra.mxu0 %v593
    %603 = vmatpush.bf16.msra.mxu0 %v592
    %604 = vmatpush.bf16.msra.mxu0 %v591
    %605 = vmatpush.bf16.msra.mxu0 %v590
    %606 = vmatpush.bf16.msra.mxu0 %v589
    %607 = vmatpush.bf16.msra.mxu0 %v588
    %608 = vmatpush.bf16.msra.mxu0 %v587
    %609 = vmatpush.bf16.msra.mxu0 %v586
    %610 = vmatmul.bf16.gmra.mxu0 %v488
    %v611 = vpop.f32.mrf.mxu0
    %v612 = vadd.f32 %v549, %v611
    %v613 = vpop.f32.mrf.mxu0
    %v614 = vadd.f32 %v551, %v613
    %615 = vdwg.mxu0
    %616 = vst [vmem:[#allocation2] sm:$0x1] %v612
    %617 = vst [vmem:[#allocation2 - $0x1] sm:$0x4] %v614
    %v618 = vld [vmem:[%s1] sm:$0x3]
    %v619 = vld [vmem:[#allocation2] sm:$0x3]
    %v620 = vperm.slane %v37, 0
    %v621 = vadd.f32 %v619, %v620
    %v622 = vpack.c.bf16 %v618, %v618
    %v623 = vld [vmem:[#allocation3 + $0x140] sm:$0xf]
    %v624 = vld [vmem:[#allocation3 + $0x144] sm:$0xf]
    %v625 = vld [vmem:[#allocation3 + $0x148] sm:$0xf]
    %v626 = vld [vmem:[#allocation3 + $0x14c] sm:$0xf]
    %v631 = vunpack.c.l.b16 %v623
    %v632 = vunpack.c.l.b16 %v624
    %v633 = vunpack.c.l.b16 %v625
    %v634 = vunpack.c.l.b16 %v626
    %v635 = vpack.c.b16 %v632, %v631
    %v636 = vpack.c.b16 %v634, %v633
    %v640 = vsel %vm87, %v622, 0
    %642 = vmatpush.bf16.msra.mxu0 0
    %643 = vmatpush.bf16.msra.mxu0 0
    %644 = vmatpush.bf16.msra.mxu0 0
    %645 = vmatpush.bf16.msra.mxu0 0
    %646 = vmatpush.bf16.msra.mxu0 0
    %647 = vmatpush.bf16.msra.mxu0 0
    %648 = vmatpush.bf16.msra.mxu0 %v636
    %649 = vmatpush.bf16.msra.mxu0 %v635
    %650 = vmatmul.bf16.gmra.mxu0 %v640
    %v651 = vpop.f32.mrf.mxu0
    %v652 = vadd.f32 0.0, %v651
    %v653 = vpop.f32.mrf.mxu0
    %654 = vdwg.mxu0
    %v655 = vadd.f32 %v621, %v652
    %v656 = vxor.u32 %v655, 2147483648
    %v657 = vmul.f32 %v656, 1.442695
    %v658 = vpow.pop %v657
    %v659 = vadd.f32 %v658, 1.0
    %v660 = vrcp.pop %v659
    %v661 = vmul.f32 %v659, %v660
    %v662 = vsub.f32 1.0, %v661
    %v663 = vmul.f32 %v660, %v662
    %v664 = vadd.f32 %v660, %v663
    %vm665 = vweird.f32 %v659
    %vm666 = vweird.f32 %v660
    %vm667 = vmor %vm665, %vm666
    %v668 = vsel %vm667, %v660, %v664
    %v669 = vand.u32 2147483647, %v659
    %vm670 = vcmp.eq.f32.partialorder %v669, 8.507059e+37
    %v671 = vand.u32 %v659, 2147483648
    %v672 = vor.u32 1.1754944e-38, %v671
    %v673 = vsel %vm670, %v672, %v668
    %v674 = vmul.f32 1.0, %v673
    %v675 = vtanh.pop %v655
    %v676 = vmul.f32 %v674, %v618
    %678 = vrot.lane.b32.xlu0 %v675, 64
    %v679 = vpop.permute.xlu0 %678
    %v681 = vmul.f32 %v674, %v679
    %683 = vrot.lane.b32.xlu0 %v681, 32
    %v684 = vpop.permute.xlu0 %683
    %v686 = vadd.f32 %v676, %v684
    %v687 = vtanh.pop %v686
    %689 = vrot.lane.b32.xlu0 %v687, 64
    %v690 = vpop.permute.xlu0 %689
    %v692 = vmul.f32 %v674, %v690
    %v693 = vpack.c.bf16 %v692, %v692
    %v694 = vld [vmem:[#allocation3 + $0x150] sm:$0xf]
    %v695 = vld [vmem:[#allocation3 + $0x154] sm:$0xf]
    %v696 = vld [vmem:[#allocation3 + $0x158] sm:$0xf]
    %v697 = vld [vmem:[#allocation3 + $0x15c] sm:$0xf]
    %v698 = vperm.slane %v38, 0
    %700 = vrot.lane.b32.xlu0 %v693, 32
    %v701 = vpop.permute.xlu0 %700
    %v706 = vunpack.c.l.b16 %v694
    %v707 = vunpack.c.l.b16 %v695
    %v708 = vunpack.c.l.b16 %v696
    %v709 = vunpack.c.l.b16 %v697
    %v710 = vpack.c.b16 %v707, %v706
    %v711 = vpack.c.b16 %v709, %v708
    %v715 = vsel %vm87, %v701, 0
    %717 = vmatpush.bf16.msra.mxu0 0
    %718 = vmatpush.bf16.msra.mxu0 0
    %719 = vmatpush.bf16.msra.mxu0 0
    %720 = vmatpush.bf16.msra.mxu0 0
    %721 = vmatpush.bf16.msra.mxu0 0
    %722 = vmatpush.bf16.msra.mxu0 0
    %723 = vmatpush.bf16.msra.mxu0 %v711
    %724 = vmatpush.bf16.msra.mxu0 %v710
    %725 = vmatmul.bf16.gmra.mxu0 %v715
    %v726 = vpop.f32.mrf.mxu0
    %v727 = vadd.f32 %v698, %v726
    %v728 = vpop.f32.mrf.mxu0
    %729 = vdwg.mxu0
    %731 = vrot.lane.b32.xlu0 %v692, 32
    %v732 = vpop.permute.xlu0 %731
    %vm734 = vcmask 254976
    %735 = vst.msk [vmem:[%s4] sm:$0x3] %vm734, %v732
    %vm736 = vcmask 517376
    %737 = vst.msk [vmem:[%s4] sm:$0x3] %vm736, %v686
    %739 = vrot.lane.b32.xlu0 %v727, 64
    %v740 = vpop.permute.xlu0 %739
    %vm742 = vcmask 1041920
    %743 = vst.msk [vmem:[%s4] sm:$0x3] %vm742, %v740
    // Predicated region
    $region22: #{forward.1} parent=1 // pred_check
      _
    $region23: #{forward.1} parent=1 // pred_check_branch
      %745 = sbr.rel (0) target = $region25
    $region24: #{forward.1} parent=1 // pred_region
      _
    $region25: #{forward.1} parent=1 // pred_fallthru
      _
    // Predicated region
    $region26: #{forward.1} parent=1 // pred_check
      _
    $region27: #{forward.1} parent=1 // pred_check_branch
      %747 = sbr.rel (0) target = $region29
    $region28: #{forward.1} parent=1 // pred_region
      _
    $region29: #{forward.1} parent=1 // pred_fallthru
      _
    %748 = vsyncpa [#allocation4], 1

</llo_original>
